<compile_context>
chip_gen: v7x
topology: tpu7x:2x2x1
jax: 0.10.0
libtpu: 0.0.40
codegen_flags: <defaults>
</compile_context>

<pallas_src>
import jax
import jax.numpy as jnp
from jax.experimental import pallas as pl
from jax.experimental.pallas import tpu as pltpu

# ---- static model / input configuration (small synthetic shapes) -------------
N, CIN, H, W = 2, 4, 16, 16          # input: [2, 4, 16, 16] NCHW
KH = KW = 3                          # backbone conv kernel (pad=1, stride=1)
C1 = 8                               # backbone output channels
C2 = 16                              # neck output channels
NUM_CLASSES = 10                     # head output
HP, WP = H + 2, W + 2                # zero-padded spatial dims
WPC = WP * CIN                       # lane-packed (w, cin) width = 72
KPAD = 128                           # WPC zero-padded to one full lane register
PADC = 128                           # classes padded to one full lane register
INV_HW = 1.0 / float(H * W)          # average-pool scale, applied in f32


def detector_kernel(x_ref, band_ref, bbp_ref, nband_ref, bnp_ref,
                    headw_ref, bhp_ref, out_ref):
    """Single invocation: the whole (tiny) batch in one set of fat matmuls.

    x_ref:     (N, HP, KPAD)        padded images, (w, cin) lane-packed, bf16
    band_ref:  (KH*KPAD, W*C1)      kh-fused banded conv weights, bf16
    bbp_ref:   (1, W*C1)            backbone bias tiled over w, f32
    nband_ref: (W*C1, W*C2)         block-diagonal 1x1-conv (neck) weights, bf16
    bnp_ref:   (1, W*C2)            neck bias tiled over w, f32
    headw_ref: (W*C2, PADC)         classifier weight tiled over w, bf16
    bhp_ref:   (1, PADC)            classifier bias, zero-padded to 128 lanes, f32
    out_ref:   (N, PADC)            padded logits (lane-dense store)
    """
    x = x_ref[...]                                            # (N, HP, KPAD) bf16

    # backbone: 3x3 conv as ONE MXU pass -- the three h-shifted taps are
    # concatenated along lanes (128-aligned) giving K = KH*KPAD = 384,
    # M = N*H = 32 rows covering the whole batch.
    taps = jnp.concatenate([x[:, kh:kh + H, :] for kh in range(KH)], axis=2)
    taps = taps.reshape(N * H, KH * KPAD)                     # (32, 384) bf16
    acc = jnp.dot(taps, band_ref[...],
                  preferred_element_type=jnp.float32)         # (32, W*C1) f32
    h1 = jnp.maximum(acc + bbp_ref[...], 0.0)                 # (32, 128)  f32

    # neck: 1x1 conv == block-diagonal matmul in the (w, channel)-packed layout
    h2 = jnp.dot(h1.astype(jnp.bfloat16), nband_ref[...],
                 preferred_element_type=jnp.float32)
    h2 = jnp.maximum(h2 + bnp_ref[...], 0.0)                  # (32, W*C2) f32

    # head: global average pool + linear classifier.
    # sum over h (per image) -> matmul over (w, c2) -> f32 scale + bias.
    col = jnp.sum(h2.reshape(N, H, W * C2), axis=1)           # (N, W*C2)  f32
    logits = jnp.dot(col.astype(jnp.bfloat16), headw_ref[...],
                     preferred_element_type=jnp.float32)      # (N, PADC)  f32
    out_ref[...] = logits * jnp.float32(INV_HW) + bhp_ref[...]


def pack_params(params):
    """One-time weight preprocessing: banded / packed / padded layouts so the
    kernel only runs dense, lane-aligned matmuls (no in-HBM im2col)."""
    wconv, bb, wn, bn, wh, bh = params        # wconv: (KH, KW, CIN, C1) (HWIO)

    # band[kh, wp*CIN+cin, w*C1+c1] = wconv[kh, kw, cin, c1] where wp == w + kw
    shift = jnp.stack([jnp.eye(WP, W, -kw, dtype=jnp.float32)
                       for kw in range(KW)])                  # (KW, WP, W)
    band = jnp.einsum('hkio,krw->hriwo', wconv, shift)        # (KH,WP,CIN,W,C1)
    band = band.reshape(KH, WPC, W * C1)
    band = jnp.pad(band, ((0, 0), (0, KPAD - WPC), (0, 0)))   # zero-pad K to 128
    band = band.reshape(KH * KPAD, W * C1).astype(jnp.bfloat16)

    # neck: block-diagonal over w -> 1x1 conv becomes one (W*C1, W*C2) matmul
    nband = jnp.einsum('io,vw->viwo', wn, jnp.eye(W, dtype=jnp.float32))
    nband = nband.reshape(W * C1, W * C2).astype(jnp.bfloat16)

    # head: classifier weight tiled over w, classes padded 10 -> 128 so the
    # output store is unmasked / lane-dense.  The 1/(H*W) pool scale is NOT
    # folded in (applied in f32 inside the kernel for accuracy).
    wh_pad = jnp.pad(wh, ((0, 0), (0, PADC - NUM_CLASSES)))
    headw = jnp.tile(wh_pad, (W, 1)).astype(jnp.bfloat16)     # (W*C2, PADC)

    bbp = jnp.tile(bb, (1, W)).astype(jnp.float32)            # (1, W*C1)
    bnp = jnp.tile(bn, (1, W)).astype(jnp.float32)            # (1, W*C2)
    bhp = jnp.pad(bh, ((0, 0), (0, PADC - NUM_CLASSES))).astype(jnp.float32)
    return band, bbp, nband, bnp, headw, bhp


@jax.jit
def base_detector_forward(x_nchw, packed):
    band, bbp, nband, bnp, headw, bhp = packed

    # NCHW -> NHWC, zero-pad spatial (conv pad=1), fold (w, cin) into lanes,
    # pad lanes 72 -> 128, and cast to bf16 once in the wrapper (halves the
    # HBM->VMEM input bytes; the h-halo stays implicit inside the kernel).
    x = jnp.transpose(x_nchw, (0, 2, 3, 1)).astype(jnp.float32)   # (N,H,W,CIN)
    xp = jnp.pad(x, ((0, 0), (1, 1), (1, 1), (0, 0)))             # (N,HP,WP,CIN)
    x_packed = xp.reshape(N, HP, WPC)
    x_packed = jnp.pad(x_packed, ((0, 0), (0, 0), (0, KPAD - WPC)))
    x_packed = x_packed.astype(jnp.bfloat16)                      # (N,HP,KPAD)

    flops = (2 * (N * H) * (KH * KPAD) * (W * C1)
             + 2 * (N * H) * (W * C1) * (W * C2)
             + 2 * N * (W * C2) * PADC)
    bytes_accessed = (x_packed.size * 2
                      + (band.size + nband.size + headw.size) * 2
                      + (bbp.size + bnp.size + bhp.size) * 4
                      + N * PADC * 4)

    # Single invocation (no grid): at ~5 MFLOP total, per-step overhead and
    # MXU underfill dominate, so one fat M=N*H step beats any grid split
    # (including the 2-TC split on v7x).
    out = pl.pallas_call(
        detector_kernel,
        out_shape=jax.ShapeDtypeStruct((N, PADC), jnp.float32),
        in_specs=[pl.BlockSpec(memory_space=pltpu.MemorySpace.VMEM)] * 7,
        out_specs=pl.BlockSpec(memory_space=pltpu.MemorySpace.VMEM),
        cost_estimate=pl.CostEstimate(flops=flops, transcendentals=0,
                                      bytes_accessed=bytes_accessed),
    )(x_packed, band, bbp, nband, bnp, headw, bhp)

    return out[:, :NUM_CLASSES]                    # strip lane padding


def reference_forward(x_nchw, params):
    """Pure-JAX f32 reference (conv -> relu -> 1x1 -> relu -> GAP -> linear)."""
    wconv, bb, wn, bn, wh, bh = params
    x = jnp.transpose(x_nchw, (0, 2, 3, 1)).astype(jnp.float32)
    h1 = jax.lax.conv_general_dilated(
        x, wconv, window_strides=(1, 1), padding=((1, 1), (1, 1)),
        dimension_numbers=('NHWC', 'HWIO', 'NHWC'))
    h1 = jnp.maximum(h1 + bb.reshape(1, 1, 1, C1), 0.0)
    h2 = jnp.maximum(jnp.einsum('nhwc,cd->nhwd', h1, wn)
                     + bn.reshape(1, 1, 1, C2), 0.0)
    pooled = jnp.mean(h2, axis=(1, 2))                 # (N, C2)
    return pooled @ wh + bh                            # (N, NUM_CLASSES)


def init_params(key):
    # TODO(synk): weights are synthetic; a real PyTorch conv weight (OIHW)
    # would need a transpose to HWIO before pack_params.
    k1, k2, k3 = jax.random.split(key, 3)
    wconv = jax.random.normal(k1, (KH, KW, CIN, C1), jnp.float32) * 0.1
    bb = jnp.zeros((1, C1), jnp.float32)
    wn = jax.random.normal(k2, (C1, C2), jnp.float32) * 0.1
    bn = jnp.zeros((1, C2), jnp.float32)
    wh = jax.random.normal(k3, (C2, NUM_CLASSES), jnp.float32) * 0.1
    bh = jnp.zeros((1, NUM_CLASSES), jnp.float32)
    return wconv, bb, wn, bn, wh, bh


if __name__ == "__main__":
    key = jax.random.PRNGKey(0)
    kx, kp = jax.random.split(key)
    x = jax.random.normal(kx, (N, CIN, H, W), jnp.float32)   # NCHW like PyTorch
    params = init_params(kp)
    packed = pack_params(params)                             # one-time weight prep

    out = base_detector_forward(x, packed)
    out = jax.block_until_ready(out)
    assert out.shape == (N, NUM_CLASSES) and out.dtype == jnp.float32

    # correctness vs. pure-JAX f32 reference (kernel uses bf16 MXU operands)
    ref = reference_forward(x, params)
    max_err = float(jnp.max(jnp.abs(out - ref)))
    assert max_err < 1e-2, f"mismatch vs reference: max_err={max_err}"

    print("KERNEL_OK")
</pallas_src>

<mosaic_0001>
module attributes {stable_mosaic.version = 11 : i64} {
  func.func @detector_kernel(%arg0: memref<2x18x128xbf16, #tpu.memory_space<vmem>>, %arg1: memref<384x128xbf16, #tpu.memory_space<vmem>>, %arg2: memref<1x128xf32, #tpu.memory_space<vmem>>, %arg3: memref<128x256xbf16, #tpu.memory_space<vmem>>, %arg4: memref<1x256xf32, #tpu.memory_space<vmem>>, %arg5: memref<256x128xbf16, #tpu.memory_space<vmem>>, %arg6: memref<1x128xf32, #tpu.memory_space<vmem>>, %arg7: memref<2x128xf32, #tpu.memory_space<vmem>>) attributes {dimension_semantics = [], scalar_prefetch = 0 : i64, scratch_operands = 0 : i64, tpu.core_type = #tpu.core_type<tc>} {
    %c0 = arith.constant 0 : index
    %c0_0 = arith.constant 0 : index
    %c0_1 = arith.constant 0 : index
    %0 = vector.load %arg0[%c0, %c0_0, %c0_1] : memref<2x18x128xbf16, #tpu.memory_space<vmem>>, vector<2x18x128xbf16>
    %1 = vector.extract_strided_slice %0 {offsets = [0, 0, 0], sizes = [2, 16, 128], strides = [1, 1, 1]} : vector<2x18x128xbf16> to vector<2x16x128xbf16>
    %2 = vector.extract_strided_slice %0 {offsets = [0, 1, 0], sizes = [2, 16, 128], strides = [1, 1, 1]} : vector<2x18x128xbf16> to vector<2x16x128xbf16>
    %3 = vector.extract_strided_slice %0 {offsets = [0, 2, 0], sizes = [2, 16, 128], strides = [1, 1, 1]} : vector<2x18x128xbf16> to vector<2x16x128xbf16>
    %4 = tpu.concatenate %1, %2, %3 in 2 : vector<2x16x128xbf16>, vector<2x16x128xbf16>, vector<2x16x128xbf16> -> vector<2x16x384xbf16>
    %5 = vector.shape_cast %4 : vector<2x16x384xbf16> to vector<32x384xbf16>
    %c0_2 = arith.constant 0 : index
    %c0_3 = arith.constant 0 : index
    %6 = vector.load %arg1[%c0_2, %c0_3] : memref<384x128xbf16, #tpu.memory_space<vmem>>, vector<384x128xbf16>
    %cst = arith.constant dense<0.000000e+00> : vector<32x128xf32>
    %7 = tpu.matmul %5, %6, %cst {dimension_numbers = #tpu.dot_dimension_numbers<[1], [0], [0], [1], [0, 0, 1, 1], [], []>} : vector<32x384xbf16>, vector<384x128xbf16>, vector<32x128xf32> -> vector<32x128xf32>
    %c0_4 = arith.constant 0 : index
    %c0_5 = arith.constant 0 : index
    %8 = vector.load %arg2[%c0_4, %c0_5] : memref<1x128xf32, #tpu.memory_space<vmem>>, vector<1x128xf32>
    %9 = vector.broadcast %8 : vector<1x128xf32> to vector<32x128xf32>
    %10 = arith.addf %7, %9 : vector<32x128xf32>
    %cst_6 = arith.constant 0.000000e+00 : f32
    %11 = vector.broadcast %cst_6 : f32 to vector<32x128xf32>
    %12 = arith.maximumf %10, %11 : vector<32x128xf32>
    %13 = arith.truncf %12 : vector<32x128xf32> to vector<32x128xbf16>
    %c0_7 = arith.constant 0 : index
    %c0_8 = arith.constant 0 : index
    %14 = vector.load %arg3[%c0_7, %c0_8] : memref<128x256xbf16, #tpu.memory_space<vmem>>, vector<128x256xbf16>
    %cst_9 = arith.constant dense<0.000000e+00> : vector<32x256xf32>
    %15 = tpu.matmul %13, %14, %cst_9 {dimension_numbers = #tpu.dot_dimension_numbers<[1], [0], [0], [1], [0, 0, 1, 1], [], []>} : vector<32x128xbf16>, vector<128x256xbf16>, vector<32x256xf32> -> vector<32x256xf32>
    %c0_10 = arith.constant 0 : index
    %c0_11 = arith.constant 0 : index
    %16 = vector.load %arg4[%c0_10, %c0_11] : memref<1x256xf32, #tpu.memory_space<vmem>>, vector<1x256xf32>
    %17 = vector.broadcast %16 : vector<1x256xf32> to vector<32x256xf32>
    %18 = arith.addf %15, %17 : vector<32x256xf32>
    %cst_12 = arith.constant 0.000000e+00 : f32
    %19 = vector.broadcast %cst_12 : f32 to vector<32x256xf32>
    %20 = arith.maximumf %18, %19 : vector<32x256xf32>
    %21 = vector.shape_cast %20 : vector<32x256xf32> to vector<2x16x256xf32>
    %cst_13 = arith.constant dense<0.000000e+00> : vector<2x256xf32>
    %22 = vector.multi_reduction <add>, %21, %cst_13 [1] : vector<2x16x256xf32> to vector<2x256xf32>
    %23 = arith.truncf %22 : vector<2x256xf32> to vector<2x256xbf16>
    %c0_14 = arith.constant 0 : index
    %c0_15 = arith.constant 0 : index
    %24 = vector.load %arg5[%c0_14, %c0_15] : memref<256x128xbf16, #tpu.memory_space<vmem>>, vector<256x128xbf16>
    %cst_16 = arith.constant dense<0.000000e+00> : vector<2x128xf32>
    %25 = tpu.matmul %23, %24, %cst_16 {dimension_numbers = #tpu.dot_dimension_numbers<[1], [0], [0], [1], [0, 0, 1, 1], [], []>} : vector<2x256xbf16>, vector<256x128xbf16>, vector<2x128xf32> -> vector<2x128xf32>
    %cst_17 = arith.constant 3.906250e-03 : f32
    %26 = vector.broadcast %cst_17 : f32 to vector<2x128xf32>
    %27 = arith.mulf %25, %26 : vector<2x128xf32>
    %c0_18 = arith.constant 0 : index
    %c0_19 = arith.constant 0 : index
    %28 = vector.load %arg6[%c0_18, %c0_19] : memref<1x128xf32, #tpu.memory_space<vmem>>, vector<1x128xf32>
    %29 = vector.broadcast %28 : vector<1x128xf32> to vector<2x128xf32>
    %30 = arith.addf %27, %29 : vector<2x128xf32>
    %c0_20 = arith.constant 0 : index
    %c0_21 = arith.constant 0 : index
    %31 = vector.load %arg7[%c0_20, %c0_21] : memref<2x128xf32, #tpu.memory_space<vmem>>, vector<2x128xf32>
    tpu.vector_store %arg7[%c0_20, %c0_21], %30 {strides = array<i32>} : memref<2x128xf32, #tpu.memory_space<vmem>>, vector<2x128xf32>,
    return
  }
}

</mosaic_0001>

<llo_original>
// kernel: base_detector_forward.1
$region0: #{base_detector_forward.1}
  #allocation0 [shape = 'u32[]', space=smem, size = 0x4, offset = 0x4, fixed_abs, tag = 'smem constant byte address 0x4 - core index']
  #allocation1 [shape = 'u32[144,128]{1,0:T(1,128)}', space=vmem, size = 0x12000, scoped, tag = 'internal scratch']
  %s0 = inlined_call_operand.vmem [shape: bf16[2,18,128], index: 0, kind: input, shape index: {}]
  %s1 = inlined_call_operand.vmem [shape: bf16[384,128], index: 1, kind: input, shape index: {}]
  %s2 = inlined_call_operand.vmem [shape: f32[1,128], index: 2, kind: input, shape index: {}]
  %s3 = inlined_call_operand.vmem [shape: bf16[128,256], index: 3, kind: input, shape index: {}]
  %s4 = inlined_call_operand.vmem [shape: f32[1,256], index: 4, kind: input, shape index: {}]
  %s5 = inlined_call_operand.vmem [shape: bf16[256,128], index: 5, kind: input, shape index: {}]
  %s6 = inlined_call_operand.vmem [shape: f32[1,128], index: 6, kind: input, shape index: {}]
  %s7 = inlined_call_operand.hbm [shape: f32[2,128], index: 7, kind: output, shape index: {}]
  %s8 = sld [smem:[#allocation0]]
  $region38: #{base_detector_forward.1} parent=0
    _
  %s10 = ssub.s32 1, %s8
  %s11 = scalar_select 0, %s10, %s8
  $region1: #{base_detector_forward.1} parent=0
    #allocation2 [shape = 'u8[1024]{0}', space=vmem, size = 0x400, scoped, tag = 'output window, operand 0, single buffered']
    #allocation3 [shape = 's32[1]{0}', space=sflag, size = 0x4, scoped, tag = 'scoped memory for base_detector_forward.1']
    %12 = vsyncpa [#allocation3], 0
    // Predicated region
    $region2: #{base_detector_forward.1} parent=1 // pred_check
      _
    $region3: #{base_detector_forward.1} parent=1 // pred_check_branch
      %14 = sbr.rel (0) target = $region5
    $region4: #{base_detector_forward.1} parent=1 // pred_region
      _
    $region5: #{base_detector_forward.1} parent=1 // pred_fallthru
      _
    // Predicated region
    $region6: #{base_detector_forward.1} parent=1 // pred_check
      _
    $region7: #{base_detector_forward.1} parent=1 // pred_check_branch
      %16 = sbr.rel (0) target = $region9
    $region8: #{base_detector_forward.1} parent=1 // pred_region
      _
    $region9: #{base_detector_forward.1} parent=1 // pred_fallthru
      _
    // Predicated region
    $region10: #{base_detector_forward.1} parent=1 // pred_check
      _
    $region11: #{base_detector_forward.1} parent=1 // pred_check_branch
      %18 = sbr.rel (0) target = $region13
    $region12: #{base_detector_forward.1} parent=1 // pred_region
      _
    $region13: #{base_detector_forward.1} parent=1 // pred_fallthru
      _
    // Predicated region
    $region14: #{base_detector_forward.1} parent=1 // pred_check
      _
    $region15: #{base_detector_forward.1} parent=1 // pred_check_branch
      %20 = sbr.rel (0) target = $region17
    $region16: #{base_detector_forward.1} parent=1 // pred_region
      _
    $region17: #{base_detector_forward.1} parent=1 // pred_fallthru
      _
    // Predicated region
    $region18: #{base_detector_forward.1} parent=1 // pred_check
      _
    $region19: #{base_detector_forward.1} parent=1 // pred_check_branch
      %22 = sbr.rel (0) target = $region21
    $region20: #{base_detector_forward.1} parent=1 // pred_region
      _
    $region21: #{base_detector_forward.1} parent=1 // pred_fallthru
      _
    // Predicated region
    $region22: #{base_detector_forward.1} parent=1 // pred_check
      _
    $region23: #{base_detector_forward.1} parent=1 // pred_check_branch
      %24 = sbr.rel (0) target = $region25
    $region24: #{base_detector_forward.1} parent=1 // pred_region
      _
    $region25: #{base_detector_forward.1} parent=1 // pred_fallthru
      _
    // Predicated region
    $region26: #{base_detector_forward.1} parent=1 // pred_check
      _
    $region27: #{base_detector_forward.1} parent=1 // pred_check_branch
      %26 = sbr.rel (0) target = $region29
    $region28: #{base_detector_forward.1} parent=1 // pred_region
      _
    $region29: #{base_detector_forward.1} parent=1 // pred_fallthru
      _
    %v28 = vld [vmem:[%s0] sm:$0xf]
    %v29 = vld [vmem:[%s0 + $0x4] sm:$0xf]
    %v30 = vld [vmem:[%s0 + $0x8] sm:$0x1]
    %v31 = vld [vmem:[%s0 + $0xc] sm:$0xf]
    %v32 = vld [vmem:[%s0 + $0x10] sm:$0xf]
    %v33 = vld [vmem:[%s0 + $0x14] sm:$0x1]
    %v38 = vunpack.c.l.b16 %v28
    %v39 = vunpack.c.l.b16 %v29
    %v40 = vunpack.c.l.b16 %v31
    %v41 = vunpack.c.l.b16 %v32
    %v42 = vpack.c.b16 %v39, %v38
    %v43 = vpack.c.b16 %v41, %v40
    %v48 = vunpack.c.l.b16 %v30
    %v49 = vunpack.c.l.b16 %v33
    %v50 = vpack.c.b16 %v48, %v48
    %v51 = vpack.c.b16 %v49, %v49
    %vm52 = vsmask.f32 7424
    %v54 = vshrl.u32 %v42, 16
    %v56 = vshll.u32 %v42, 16
    %v58 = vrot.slane %v56, 1
    %v59 = vor.u32 %v54, %v58
    %v61 = vshll.u32 %v50, 16
    %v63 = vrot.slane %v61, 1
    %v64 = vsel %vm52, %v59, %v63
    %v66 = vshrl.u32 %v43, 16
    %v68 = vshll.u32 %v43, 16
    %v70 = vrot.slane %v68, 1
    %v71 = vor.u32 %v66, %v70
    %v73 = vshll.u32 %v51, 16
    %v75 = vrot.slane %v73, 1
    %v76 = vsel %vm52, %v71, %v75
    %vm79 = vcmask 1046528
    %v80 = vrot.slane %v42, 1
    %v81 = vrot.slane %v50, 1
    %v82 = vsel %vm79, %v80, %v81
    %v83 = vrot.slane %v43, 1
    %v84 = vrot.slane %v51, 1
    %v85 = vsel %vm79, %v83, %v84
    %v88 = vld [vmem:[%s1] sm:$0xf]
    %v89 = vld [vmem:[%s1 + $0x4] sm:$0xf]
    %v90 = vld [vmem:[%s1 + $0x8] sm:$0xf]
    %v91 = vld [vmem:[%s1 + $0xc] sm:$0xf]
    %v92 = vld [vmem:[%s1 + $0x10] sm:$0xf]
    %v93 = vld [vmem:[%s1 + $0x14] sm:$0xf]
    %v94 = vld [vmem:[%s1 + $0x18] sm:$0xf]
    %v95 = vld [vmem:[%s1 + $0x1c] sm:$0xf]
    %v96 = vld [vmem:[%s1 + $0x20] sm:$0xf]
    %v97 = vld [vmem:[%s1 + $0x24] sm:$0xf]
    %v98 = vld [vmem:[%s1 + $0x28] sm:$0xf]
    %v99 = vld [vmem:[%s1 + $0x2c] sm:$0xf]
    %v100 = vld [vmem:[%s1 + $0x30] sm:$0xf]
    %v101 = vld [vmem:[%s1 + $0x34] sm:$0xf]
    %v102 = vld [vmem:[%s1 + $0x38] sm:$0xf]
    %v103 = vld [vmem:[%s1 + $0x3c] sm:$0xf]
    %v104 = vld [vmem:[%s1 + $0x40] sm:$0xf]
    %v105 = vld [vmem:[%s1 + $0x44] sm:$0xf]
    %v106 = vld [vmem:[%s1 + $0x48] sm:$0xf]
    %v107 = vld [vmem:[%s1 + $0x4c] sm:$0xf]
    %v108 = vld [vmem:[%s1 + $0x50] sm:$0xf]
    %v109 = vld [vmem:[%s1 + $0x54] sm:$0xf]
    %v110 = vld [vmem:[%s1 + $0x58] sm:$0xf]
    %v111 = vld [vmem:[%s1 + $0x5c] sm:$0xf]
    %v112 = vld [vmem:[%s1 + $0x60] sm:$0xf]
    %v113 = vld [vmem:[%s1 + $0x64] sm:$0xf]
    %v114 = vld [vmem:[%s1 + $0x68] sm:$0xf]
    %v115 = vld [vmem:[%s1 + $0x6c] sm:$0xf]
    %v116 = vld [vmem:[%s1 + $0x70] sm:$0xf]
    %v117 = vld [vmem:[%s1 + $0x74] sm:$0xf]
    %v118 = vld [vmem:[%s1 + $0x78] sm:$0xf]
    %v119 = vld [vmem:[%s1 + $0x7c] sm:$0xf]
    %v120 = vld [vmem:[%s1 + $0x80] sm:$0xf]
    %v121 = vld [vmem:[%s1 + $0x84] sm:$0xf]
    %v122 = vld [vmem:[%s1 + $0x88] sm:$0xf]
    %v123 = vld [vmem:[%s1 + $0x8c] sm:$0xf]
    %v124 = vld [vmem:[%s1 + $0x90] sm:$0xf]
    %v125 = vld [vmem:[%s1 + $0x94] sm:$0xf]
    %v126 = vld [vmem:[%s1 + $0x98] sm:$0xf]
    %v127 = vld [vmem:[%s1 + $0x9c] sm:$0xf]
    %v128 = vld [vmem:[%s1 + $0xa0] sm:$0xf]
    %v129 = vld [vmem:[%s1 + $0xa4] sm:$0xf]
    %v130 = vld [vmem:[%s1 + $0xa8] sm:$0xf]
    %v131 = vld [vmem:[%s1 + $0xac] sm:$0xf]
    %v132 = vld [vmem:[%s1 + $0xb0] sm:$0xf]
    %v133 = vld [vmem:[%s1 + $0xb4] sm:$0xf]
    %v134 = vld [vmem:[%s1 + $0xb8] sm:$0xf]
    %v135 = vld [vmem:[%s1 + $0xbc] sm:$0xf]
    %v136 = vld [vmem:[%s2] sm:$0x1]
    %v138 = vlaneseq
    %v139 = vshrl.u32 %v138, 7
    %v140 = vsub.s32 0, %v139
    %v141 = vrot.slane %v136, %v140
    %v191 = vunpack.c.l.b16 %v88
    %v192 = vunpack.c.l.b16 %v89
    %v193 = vunpack.c.l.b16 %v90
    %v194 = vunpack.c.l.b16 %v91
    %v195 = vunpack.c.l.b16 %v92
    %v196 = vunpack.c.l.b16 %v93
    %v197 = vunpack.c.l.b16 %v94
    %v198 = vunpack.c.l.b16 %v95
    %v199 = vunpack.c.l.b16 %v96
    %v200 = vunpack.c.l.b16 %v97
    %v201 = vunpack.c.l.b16 %v98
    %v202 = vunpack.c.l.b16 %v99
    %v203 = vunpack.c.l.b16 %v100
    %v204 = vunpack.c.l.b16 %v101
    %v205 = vunpack.c.l.b16 %v102
    %v206 = vunpack.c.l.b16 %v103
    %v207 = vunpack.c.l.b16 %v104
    %v208 = vunpack.c.l.b16 %v105
    %v209 = vunpack.c.l.b16 %v106
    %v210 = vunpack.c.l.b16 %v107
    %v211 = vunpack.c.l.b16 %v108
    %v212 = vunpack.c.l.b16 %v109
    %v213 = vunpack.c.l.b16 %v110
    %v214 = vunpack.c.l.b16 %v111
    %v215 = vunpack.c.l.b16 %v112
    %v216 = vunpack.c.l.b16 %v113
    %v217 = vunpack.c.l.b16 %v114
    %v218 = vunpack.c.l.b16 %v115
    %v219 = vunpack.c.l.b16 %v116
    %v220 = vunpack.c.l.b16 %v117
    %v221 = vunpack.c.l.b16 %v118
    %v222 = vunpack.c.l.b16 %v119
    %v223 = vunpack.c.l.b16 %v120
    %v224 = vunpack.c.l.b16 %v121
    %v225 = vunpack.c.l.b16 %v122
    %v226 = vunpack.c.l.b16 %v123
    %v227 = vunpack.c.l.b16 %v124
    %v228 = vunpack.c.l.b16 %v125
    %v229 = vunpack.c.l.b16 %v126
    %v230 = vunpack.c.l.b16 %v127
    %v231 = vunpack.c.l.b16 %v128
    %v232 = vunpack.c.l.b16 %v129
    %v233 = vunpack.c.l.b16 %v130
    %v234 = vunpack.c.l.b16 %v131
    %v235 = vunpack.c.l.b16 %v132
    %v236 = vunpack.c.l.b16 %v133
    %v237 = vunpack.c.l.b16 %v134
    %v238 = vunpack.c.l.b16 %v135
    %v239 = vpack.c.b16 %v192, %v191
    %v240 = vpack.c.b16 %v194, %v193
    %v241 = vpack.c.b16 %v196, %v195
    %v242 = vpack.c.b16 %v198, %v197
    %v243 = vpack.c.b16 %v200, %v199
    %v244 = vpack.c.b16 %v202, %v201
    %v245 = vpack.c.b16 %v204, %v203
    %v246 = vpack.c.b16 %v206, %v205
    %v247 = vpack.c.b16 %v208, %v207
    %v248 = vpack.c.b16 %v210, %v209
    %v249 = vpack.c.b16 %v212, %v211
    %v250 = vpack.c.b16 %v214, %v213
    %v251 = vpack.c.b16 %v216, %v215
    %v252 = vpack.c.b16 %v218, %v217
    %v253 = vpack.c.b16 %v220, %v219
    %v254 = vpack.c.b16 %v222, %v221
    %v255 = vpack.c.b16 %v224, %v223
    %v256 = vpack.c.b16 %v226, %v225
    %v257 = vpack.c.b16 %v228, %v227
    %v258 = vpack.c.b16 %v230, %v229
    %v259 = vpack.c.b16 %v232, %v231
    %v260 = vpack.c.b16 %v234, %v233
    %v261 = vpack.c.b16 %v236, %v235
    %v262 = vpack.c.b16 %v238, %v237
    %287 = vmatprep.subr.bf16.mxu0 0
    %288 = vmatpush1.bf16.msra.mxu0 %v239
    %289 = vmatprep.subr.bf16.mxu0 0
    %290 = vmatpush1.bf16.msra.mxu0 %v240
    %291 = vmatprep.subr.bf16.mxu0 0
    %292 = vmatpush1.bf16.msra.mxu0 %v241
    %293 = vmatprep.subr.bf16.mxu0 0
    %294 = vmatpush1.bf16.msra.mxu0 %v242
    %295 = vmatprep.subr.bf16.mxu0 0
    %296 = vmatpush1.bf16.msra.mxu0 %v243
    %297 = vmatprep.subr.bf16.mxu0 0
    %298 = vmatpush1.bf16.msra.mxu0 %v244
    %299 = vmatprep.subr.bf16.mxu0 0
    %300 = vmatpush1.bf16.msra.mxu0 %v245
    %301 = vmatprep.subr.bf16.mxu0 0
    %302 = vmatpush1.bf16.msra.mxu0 %v246
    %303 = vmatprep.subr.bf16.mxu0 0
    %304 = vmatpush1.bf16.msra.mxu0 %v247
    %305 = vmatprep.subr.bf16.mxu0 0
    %306 = vmatpush1.bf16.msra.mxu0 %v248
    %307 = vmatprep.subr.bf16.mxu0 0
    %308 = vmatpush1.bf16.msra.mxu0 %v249
    %309 = vmatprep.subr.bf16.mxu0 0
    %310 = vmatpush1.bf16.msra.mxu0 %v250
    %311 = vmatprep.subr.bf16.mxu0 0
    %312 = vmatpush1.bf16.msra.mxu0 %v251
    %313 = vmatprep.subr.bf16.mxu0 0
    %314 = vmatpush1.bf16.msra.mxu0 %v252
    %315 = vmatprep.subr.bf16.mxu0 0
    %316 = vmatpush1.bf16.msra.mxu0 %v253
    %317 = vmatprep.subr.bf16.mxu0 0
    %318 = vmatpush1.bf16.msra.mxu0 %v254
    %319 = vmatprep.mubr.bf16.mxu0 %v64
    %320 = vmatmul.mubr.bf16.gmra.mrb[0].mxu0 %v42
    %v321 = vpop.f32.mrb[0].mxu0
    %v322 = vadd.f32 %v141, %v321
    %v323 = vpop.f32.mrb[0].mxu0
    %v324 = vpop.f32.mrb[0].mxu0
    %v325 = vadd.f32 %v141, %v324
    %v326 = vpop.f32.mrb[0].mxu0
    %327 = vmatprep.mubr.bf16.mxu0 %v76
    %328 = vmatmul.mubr.bf16.gmra.mrb[0].mxu0 %v43
    %v329 = vpop.f32.mrb[0].mxu0
    %v330 = vadd.f32 %v141, %v329
    %v331 = vpop.f32.mrb[0].mxu0
    %v332 = vpop.f32.mrb[0].mxu0
    %v333 = vadd.f32 %v141, %v332
    %v334 = vpop.f32.mrb[0].mxu0
    %335 = vdwg.mxu0
    %336 = vmatprep.subr.bf16.mxu0 0
    %337 = vmatpush1.bf16.msra.mxu0 %v255
    %338 = vmatprep.subr.bf16.mxu0 0
    %339 = vmatpush1.bf16.msra.mxu0 %v256
    %340 = vmatprep.subr.bf16.mxu0 0
    %341 = vmatpush1.bf16.msra.mxu0 %v257
    %342 = vmatprep.subr.bf16.mxu0 0
    %343 = vmatpush1.bf16.msra.mxu0 %v258
    %344 = vmatprep.subr.bf16.mxu0 0
    %345 = vmatpush1.bf16.msra.mxu0 %v259
    %346 = vmatprep.subr.bf16.mxu0 0
    %347 = vmatpush1.bf16.msra.mxu0 %v260
    %348 = vmatprep.subr.bf16.mxu0 0
    %349 = vmatpush1.bf16.msra.mxu0 %v261
    %350 = vmatprep.subr.bf16.mxu0 0
    %351 = vmatpush1.bf16.msra.mxu0 %v262
    %352 = vmatprep.subr.bf16.mxu0 0
    %353 = vmatpush1.bf16.msra.mxu0 0
    %354 = vmatprep.subr.bf16.mxu0 0
    %355 = vmatpush1.bf16.msra.mxu0 0
    %356 = vmatprep.subr.bf16.mxu0 0
    %357 = vmatpush1.bf16.msra.mxu0 0
    %358 = vmatprep.subr.bf16.mxu0 0
    %359 = vmatpush1.bf16.msra.mxu0 0
    %360 = vmatprep.subr.bf16.mxu0 0
    %361 = vmatpush1.bf16.msra.mxu0 0
    %362 = vmatprep.subr.bf16.mxu0 0
    %363 = vmatpush1.bf16.msra.mxu0 0
    %364 = vmatprep.subr.bf16.mxu0 0
    %365 = vmatpush1.bf16.msra.mxu0 0
    %366 = vmatprep.subr.bf16.mxu0 0
    %367 = vmatpush1.bf16.msra.mxu0 0
    %368 = vmatprep.mubr.bf16.mxu0 0
    %369 = vmatmul.mubr.bf16.gmra.mrb[0].mxu0 %v82
    %v370 = vpop.f32.mrb[0].mxu0
    %v371 = vadd.f32 %v322, %v370
    %v372 = vpop.f32.mrb[0].mxu0
    %v373 = vpop.f32.mrb[0].mxu0
    %v374 = vadd.f32 %v325, %v373
    %v375 = vpop.f32.mrb[0].mxu0
    %376 = vmatprep.mubr.bf16.mxu0 0
    %377 = vmatmul.mubr.bf16.gmra.mrb[0].mxu0 %v85
    %v378 = vpop.f32.mrb[0].mxu0
    %v379 = vadd.f32 %v330, %v378
    %v380 = vpop.f32.mrb[0].mxu0
    %v381 = vpop.f32.mrb[0].mxu0
    %v382 = vadd.f32 %v333, %v381
    %v383 = vpop.f32.mrb[0].mxu0
    %384 = vdwg.mxu0
    %v385 = vmax.f32 %v371, 0.0
    %v386 = vmax.f32 %v374, 0.0
    %v387 = vmax.f32 %v379, 0.0
    %v388 = vmax.f32 %v382, 0.0
    %v389 = vpack.c.bf16 %v386, %v385
    %v390 = vpack.c.bf16 %v388, %v387
    %v391 = vld [vmem:[%s3] sm:$0xff]
    %v392 = vld [vmem:[%s3 + $0x8] sm:$0xff]
    %v393 = vld [vmem:[%s3 + $0x10] sm:$0xff]
    %v394 = vld [vmem:[%s3 + $0x18] sm:$0xff]
    %v395 = vld [vmem:[%s3 + $0x20] sm:$0xff]
    %v396 = vld [vmem:[%s3 + $0x28] sm:$0xff]
    %v397 = vld [vmem:[%s3 + $0x30] sm:$0xff]
    %v398 = vld [vmem:[%s3 + $0x38] sm:$0xff]
    %v399 = vld [vmem:[%s3 + $0x40] sm:$0xff]
    %v400 = vld [vmem:[%s3 + $0x48] sm:$0xff]
    %v401 = vld [vmem:[%s3 + $0x50] sm:$0xff]
    %v402 = vld [vmem:[%s3 + $0x58] sm:$0xff]
    %v403 = vld [vmem:[%s3 + $0x60] sm:$0xff]
    %v404 = vld [vmem:[%s3 + $0x68] sm:$0xff]
    %v405 = vld [vmem:[%s3 + $0x70] sm:$0xff]
    %v406 = vld [vmem:[%s3 + $0x78] sm:$0xff]
    %v407 = vld [vmem:[%s4] sm:$0x3]
    %v409 = vlaneseq
    %v410 = vshrl.u32 %v409, 7
    %v411 = vsub.s32 0, %v410
    %v412 = vrot.slane %v407, %v411
    %v413 = vlaneseq
    %v414 = vshrl.u32 %v413, 7
    %v415 = vsub.s32 1, %v414
    %v416 = vrot.slane %v407, %v415
    %v435 = vunpack.c.l.b16 %v391
    %v436 = vunpack.c.h.b16 %v391
    %v437 = vunpack.c.l.b16 %v392
    %v438 = vunpack.c.h.b16 %v392
    %v439 = vunpack.c.l.b16 %v393
    %v440 = vunpack.c.h.b16 %v393
    %v441 = vunpack.c.l.b16 %v394
    %v442 = vunpack.c.h.b16 %v394
    %v443 = vunpack.c.l.b16 %v395
    %v444 = vunpack.c.h.b16 %v395
    %v445 = vunpack.c.l.b16 %v396
    %v446 = vunpack.c.h.b16 %v396
    %v447 = vunpack.c.l.b16 %v397
    %v448 = vunpack.c.h.b16 %v397
    %v449 = vunpack.c.l.b16 %v398
    %v450 = vunpack.c.h.b16 %v398
    %v451 = vunpack.c.l.b16 %v399
    %v452 = vunpack.c.h.b16 %v399
    %v453 = vunpack.c.l.b16 %v400
    %v454 = vunpack.c.h.b16 %v400
    %v455 = vunpack.c.l.b16 %v401
    %v456 = vunpack.c.h.b16 %v401
    %v457 = vunpack.c.l.b16 %v402
    %v458 = vunpack.c.h.b16 %v402
    %v459 = vunpack.c.l.b16 %v403
    %v460 = vunpack.c.h.b16 %v403
    %v461 = vunpack.c.l.b16 %v404
    %v462 = vunpack.c.h.b16 %v404
    %v463 = vunpack.c.l.b16 %v405
    %v464 = vunpack.c.h.b16 %v405
    %v465 = vunpack.c.l.b16 %v406
    %v466 = vunpack.c.h.b16 %v406
    %v467 = vpack.c.b16 %v437, %v435
    %v468 = vpack.c.b16 %v438, %v436
    %v469 = vpack.c.b16 %v441, %v439
    %v470 = vpack.c.b16 %v442, %v440
    %v471 = vpack.c.b16 %v445, %v443
    %v472 = vpack.c.b16 %v446, %v444
    %v473 = vpack.c.b16 %v449, %v447
    %v474 = vpack.c.b16 %v450, %v448
    %v475 = vpack.c.b16 %v453, %v451
    %v476 = vpack.c.b16 %v454, %v452
    %v477 = vpack.c.b16 %v457, %v455
    %v478 = vpack.c.b16 %v458, %v456
    %v479 = vpack.c.b16 %v461, %v459
    %v480 = vpack.c.b16 %v462, %v460
    %v481 = vpack.c.b16 %v465, %v463
    %v482 = vpack.c.b16 %v466, %v464
    %499 = vmatprep.subr.bf16.mxu0 %v468
    %500 = vmatpush1.bf16.msra.mxu0 %v467
    %501 = vmatprep.subr.bf16.mxu0 %v470
    %502 = vmatpush1.bf16.msra.mxu0 %v469
    %503 = vmatprep.subr.bf16.mxu0 %v472
    %504 = vmatpush1.bf16.msra.mxu0 %v471
    %505 = vmatprep.subr.bf16.mxu0 %v474
    %506 = vmatpush1.bf16.msra.mxu0 %v473
    %507 = vmatprep.subr.bf16.mxu0 %v476
    %508 = vmatpush1.bf16.msra.mxu0 %v475
    %509 = vmatprep.subr.bf16.mxu0 %v478
    %510 = vmatpush1.bf16.msra.mxu0 %v477
    %511 = vmatprep.subr.bf16.mxu0 %v480
    %512 = vmatpush1.bf16.msra.mxu0 %v479
    %513 = vmatprep.subr.bf16.mxu0 %v482
    %514 = vmatpush1.bf16.msra.mxu0 %v481
    %515 = vmatprep.subr.bf16.mxu0 0
    %516 = vmatpush1.bf16.msra.mxu0 0
    %517 = vmatprep.subr.bf16.mxu0 0
    %518 = vmatpush1.bf16.msra.mxu0 0
    %519 = vmatprep.subr.bf16.mxu0 0
    %520 = vmatpush1.bf16.msra.mxu0 0
    %521 = vmatprep.subr.bf16.mxu0 0
    %522 = vmatpush1.bf16.msra.mxu0 0
    %523 = vmatprep.subr.bf16.mxu0 0
    %524 = vmatpush1.bf16.msra.mxu0 0
    %525 = vmatprep.subr.bf16.mxu0 0
    %526 = vmatpush1.bf16.msra.mxu0 0
    %527 = vmatprep.subr.bf16.mxu0 0
    %528 = vmatpush1.bf16.msra.mxu0 0
    %529 = vmatprep.subr.bf16.mxu0 0
    %530 = vmatpush1.bf16.msra.mxu0 0
    %531 = vmatprep.mubr.bf16.mxu0 0
    %532 = vmatmul.mubr.bf16.gmra.mrb[0].mxu0 %v389
    %v533 = vpop.f32.mrb[0].mxu0
    %v534 = vadd.f32 %v412, %v533
    %v535 = vpop.f32.mrb[0].mxu0
    %v536 = vadd.f32 %v416, %v535
    %v537 = vpop.f32.mrb[0].mxu0
    %v538 = vadd.f32 %v412, %v537
    %v539 = vpop.f32.mrb[0].mxu0
    %v540 = vadd.f32 %v416, %v539
    %541 = vmatprep.mubr.bf16.mxu0 0
    %542 = vmatmul.mubr.bf16.gmra.mrb[0].mxu0 %v390
    %v543 = vpop.f32.mrb[0].mxu0
    %v544 = vadd.f32 %v412, %v543
    %v545 = vpop.f32.mrb[0].mxu0
    %v546 = vadd.f32 %v416, %v545
    %v547 = vpop.f32.mrb[0].mxu0
    %v548 = vadd.f32 %v412, %v547
    %v549 = vpop.f32.mrb[0].mxu0
    %v550 = vadd.f32 %v416, %v549
    %551 = vdwg.mxu0
    %v552 = vmax.f32 %v534, 0.0
    %v553 = vmax.f32 %v536, 0.0
    %v554 = vmax.f32 %v538, 0.0
    %v555 = vmax.f32 %v540, 0.0
    %v556 = vmax.f32 %v544, 0.0
    %v557 = vmax.f32 %v546, 0.0
    %v558 = vmax.f32 %v548, 0.0
    %v559 = vmax.f32 %v550, 0.0
    %v560 = vadd.f32 %v552, %v554
    %v561 = vrot.slane %v560, 4
    %v562 = vadd.f32 %v560, %v561
    %v563 = vrot.slane %v562, 2
    %v564 = vadd.f32 %v562, %v563
    %v565 = vrot.slane %v564, 1
    %v566 = vadd.f32 %v564, %v565
    %v567 = vadd.f32 %v553, %v555
    %v568 = vrot.slane %v567, 4
    %v569 = vadd.f32 %v567, %v568
    %v570 = vrot.slane %v569, 2
    %v571 = vadd.f32 %v569, %v570
    %v572 = vrot.slane %v571, 1
    %v573 = vadd.f32 %v571, %v572
    %v574 = vadd.f32 %v556, %v558
    %v575 = vrot.slane %v574, 4
    %v576 = vadd.f32 %v574, %v575
    %v577 = vrot.slane %v576, 2
    %v578 = vadd.f32 %v576, %v577
    %v579 = vrot.slane %v578, 1
    %v580 = vadd.f32 %v578, %v579
    %v581 = vadd.f32 %v557, %v559
    %v582 = vrot.slane %v581, 4
    %v583 = vadd.f32 %v581, %v582
    %v584 = vrot.slane %v583, 2
    %v585 = vadd.f32 %v583, %v584
    %v586 = vrot.slane %v585, 1
    %v587 = vadd.f32 %v585, %v586
    %v588 = vpack.c.bf16 %v566, %v566
    %v589 = vpack.c.bf16 %v573, %v573
    %v590 = vpack.c.bf16 %v580, %v580
    %v591 = vpack.c.bf16 %v587, %v587
    %v592 = vld [vmem:[%s5] sm:$0xf]
    %v593 = vld [vmem:[%s5 + $0x4] sm:$0xf]
    %v594 = vld [vmem:[%s5 + $0x8] sm:$0xf]
    %v595 = vld [vmem:[%s5 + $0xc] sm:$0xf]
    %v596 = vld [vmem:[%s5 + $0x10] sm:$0xf]
    %v597 = vld [vmem:[%s5 + $0x14] sm:$0xf]
    %v598 = vld [vmem:[%s5 + $0x18] sm:$0xf]
    %v599 = vld [vmem:[%s5 + $0x1c] sm:$0xf]
    %v600 = vld [vmem:[%s5 + $0x20] sm:$0xf]
    %v601 = vld [vmem:[%s5 + $0x24] sm:$0xf]
    %v602 = vld [vmem:[%s5 + $0x28] sm:$0xf]
    %v603 = vld [vmem:[%s5 + $0x2c] sm:$0xf]
    %v604 = vld [vmem:[%s5 + $0x30] sm:$0xf]
    %v605 = vld [vmem:[%s5 + $0x34] sm:$0xf]
    %v606 = vld [vmem:[%s5 + $0x38] sm:$0xf]
    %v607 = vld [vmem:[%s5 + $0x3c] sm:$0xf]
    %v608 = vld [vmem:[%s5 + $0x40] sm:$0xf]
    %v609 = vld [vmem:[%s5 + $0x44] sm:$0xf]
    %v610 = vld [vmem:[%s5 + $0x48] sm:$0xf]
    %v611 = vld [vmem:[%s5 + $0x4c] sm:$0xf]
    %v612 = vld [vmem:[%s5 + $0x50] sm:$0xf]
    %v613 = vld [vmem:[%s5 + $0x54] sm:$0xf]
    %v614 = vld [vmem:[%s5 + $0x58] sm:$0xf]
    %v615 = vld [vmem:[%s5 + $0x5c] sm:$0xf]
    %v616 = vld [vmem:[%s5 + $0x60] sm:$0xf]
    %v617 = vld [vmem:[%s5 + $0x64] sm:$0xf]
    %v618 = vld [vmem:[%s5 + $0x68] sm:$0xf]
    %v619 = vld [vmem:[%s5 + $0x6c] sm:$0xf]
    %v620 = vld [vmem:[%s5 + $0x70] sm:$0xf]
    %v621 = vld [vmem:[%s5 + $0x74] sm:$0xf]
    %v622 = vld [vmem:[%s5 + $0x78] sm:$0xf]
    %v623 = vld [vmem:[%s5 + $0x7c] sm:$0xf]
    %v628 = vunpack.c.l.b16 %v588
    %v629 = vunpack.c.l.b16 %v589
    %v630 = vunpack.c.l.b16 %v590
    %v631 = vunpack.c.l.b16 %v591
    %vm632 = vcmask 1041409
    %v633 = vsel %vm632, %v630, %v628
    %v634 = vsel %vm632, %v631, %v629
    %v635 = vpack.c.b16 %v633, %v633
    %v636 = vpack.c.b16 %v634, %v634
    %v671 = vunpack.c.l.b16 %v592
    %v672 = vunpack.c.l.b16 %v593
    %v673 = vunpack.c.l.b16 %v594
    %v674 = vunpack.c.l.b16 %v595
    %v675 = vunpack.c.l.b16 %v596
    %v676 = vunpack.c.l.b16 %v597
    %v677 = vunpack.c.l.b16 %v598
    %v678 = vunpack.c.l.b16 %v599
    %v679 = vunpack.c.l.b16 %v600
    %v680 = vunpack.c.l.b16 %v601
    %v681 = vunpack.c.l.b16 %v602
    %v682 = vunpack.c.l.b16 %v603
    %v683 = vunpack.c.l.b16 %v604
    %v684 = vunpack.c.l.b16 %v605
    %v685 = vunpack.c.l.b16 %v606
    %v686 = vunpack.c.l.b16 %v607
    %v687 = vunpack.c.l.b16 %v608
    %v688 = vunpack.c.l.b16 %v609
    %v689 = vunpack.c.l.b16 %v610
    %v690 = vunpack.c.l.b16 %v611
    %v691 = vunpack.c.l.b16 %v612
    %v692 = vunpack.c.l.b16 %v613
    %v693 = vunpack.c.l.b16 %v614
    %v694 = vunpack.c.l.b16 %v615
    %v695 = vunpack.c.l.b16 %v616
    %v696 = vunpack.c.l.b16 %v617
    %v697 = vunpack.c.l.b16 %v618
    %v698 = vunpack.c.l.b16 %v619
    %v699 = vunpack.c.l.b16 %v620
    %v700 = vunpack.c.l.b16 %v621
    %v701 = vunpack.c.l.b16 %v622
    %v702 = vunpack.c.l.b16 %v623
    %v703 = vpack.c.b16 %v672, %v671
    %v704 = vpack.c.b16 %v674, %v673
    %v705 = vpack.c.b16 %v676, %v675
    %v706 = vpack.c.b16 %v678, %v677
    %v707 = vpack.c.b16 %v680, %v679
    %v708 = vpack.c.b16 %v682, %v681
    %v709 = vpack.c.b16 %v684, %v683
    %v710 = vpack.c.b16 %v686, %v685
    %v711 = vpack.c.b16 %v688, %v687
    %v712 = vpack.c.b16 %v690, %v689
    %v713 = vpack.c.b16 %v692, %v691
    %v714 = vpack.c.b16 %v694, %v693
    %v715 = vpack.c.b16 %v696, %v695
    %v716 = vpack.c.b16 %v698, %v697
    %v717 = vpack.c.b16 %v700, %v699
    %v718 = vpack.c.b16 %v702, %v701
    %735 = vmatprep.subr.bf16.mxu0 0
    %736 = vmatpush1.bf16.msra.mxu0 %v703
    %737 = vmatprep.subr.bf16.mxu0 0
    %738 = vmatpush1.bf16.msra.mxu0 %v704
    %739 = vmatprep.subr.bf16.mxu0 0
    %740 = vmatpush1.bf16.msra.mxu0 %v705
    %741 = vmatprep.subr.bf16.mxu0 0
    %742 = vmatpush1.bf16.msra.mxu0 %v706
    %743 = vmatprep.subr.bf16.mxu0 0
    %744 = vmatpush1.bf16.msra.mxu0 %v707
    %745 = vmatprep.subr.bf16.mxu0 0
    %746 = vmatpush1.bf16.msra.mxu0 %v708
    %747 = vmatprep.subr.bf16.mxu0 0
    %748 = vmatpush1.bf16.msra.mxu0 %v709
    %749 = vmatprep.subr.bf16.mxu0 0
    %750 = vmatpush1.bf16.msra.mxu0 %v710
    %751 = vmatprep.subr.bf16.mxu0 0
    %752 = vmatpush1.bf16.msra.mxu0 %v711
    %753 = vmatprep.subr.bf16.mxu0 0
    %754 = vmatpush1.bf16.msra.mxu0 %v712
    %755 = vmatprep.subr.bf16.mxu0 0
    %756 = vmatpush1.bf16.msra.mxu0 %v713
    %757 = vmatprep.subr.bf16.mxu0 0
    %758 = vmatpush1.bf16.msra.mxu0 %v714
    %759 = vmatprep.subr.bf16.mxu0 0
    %760 = vmatpush1.bf16.msra.mxu0 %v715
    %761 = vmatprep.subr.bf16.mxu0 0
    %762 = vmatpush1.bf16.msra.mxu0 %v716
    %763 = vmatprep.subr.bf16.mxu0 0
    %764 = vmatpush1.bf16.msra.mxu0 %v717
    %765 = vmatprep.subr.bf16.mxu0 0
    %766 = vmatpush1.bf16.msra.mxu0 %v718
    %767 = vmatprep.mubr.bf16.mxu0 %v636
    %768 = vmatmul.mubr.bf16.gmra.mrb[0].mxu0 %v635
    %v769 = vpop.f32.mrb[0].mxu0
    %v770 = vadd.f32 0.0, %v769
    %v771 = vpop.f32.mrb[0].mxu0
    %v772 = vpop.f32.mrb[0].mxu0
    %v773 = vpop.f32.mrb[0].mxu0
    %774 = vdwg.mxu0
    %v775 = vmul.f32 %v770, 0.00390625
    %v776 = vld [vmem:[%s6] sm:$0x1]
    %v778 = vlaneseq
    %v779 = vshrl.u32 %v778, 7
    %v780 = vsub.s32 0, %v779
    %v781 = vrot.slane %v776, %v780
    %v783 = vadd.f32 %v775, %v781
    %784 = vst [vmem:[#allocation2] sm:$0x3] %v783
    // Predicated region
    $region30: #{base_detector_forward.1} parent=1 // pred_check
      _
    $region31: #{base_detector_forward.1} parent=1 // pred_check_branch
      %786 = sbr.rel (0) target = $region33
    $region32: #{base_detector_forward.1} parent=1 // pred_region
      %s788 = ssub.s32 32, 32
      %789 = vsyncadd [#allocation3], %s788
      %s791 = sshll.u32 [#allocation2], 4
      %s792 = int_to_ptr.vmem [resolvable:$true] %s791
      %794 = dma.vmem_to_hbm [thread:$0]  %s792, 32, %s7, [#allocation3]
    $region33: #{base_detector_forward.1} parent=1 // pred_fallthru
      _
    // Predicated region
    $region34: #{base_detector_forward.1} parent=1 // pred_check
      _
    $region35: #{base_detector_forward.1} parent=1 // pred_check_branch
      %796 = sbr.rel (0) target = $region37
    $region36: #{base_detector_forward.1} parent=1 // pred_region
      %797 = dma.done [#allocation3], 32
    $region37: #{base_detector_forward.1} parent=1 // pred_fallthru
      _
    %798 = vsyncpa [#allocation3], 1

</llo_original>
